<compile_context>
chip_gen: v5e
topology: v5e:2x2
jax: 0.10.0
libtpu: 0.0.40
codegen_flags: <defaults>
</compile_context>

<pallas_src>
import functools
import math

import jax
import jax.numpy as jnp
from jax.experimental import pallas as pl
from jax.experimental.pallas import tpu as pltpu

LN_EPS = 1e-5  # matches torch.nn.LayerNorm default
_VMEM_BUDGET = 24 * 1024 * 1024   # conservative tile budget (bytes)
_VMEM_LIMIT = 32 * 1024 * 1024    # safe scoped-VMEM request on v5e/v6e/v7x


def _patch_merge_kernel(xe_ref, xo_ref, we_ref, wo_ref, g_ref, b_ref, o_ref):
    """Fused 2x2-merge + Linear(4C->2C, no bias) + LayerNorm(2C).

    xe_ref: (th, Wh, 2C)   even-h rows, each row = [x0 | x2] features
    xo_ref: (th, Wh, 2C)   odd-h  rows, each row = [x1 | x3] features
    we_ref: (2C, 2Cout)    weight rows matching [x0 | x2]
    wo_ref: (2C, 2Cout)    weight rows matching [x1 | x3]
    g_ref : (1, 2Cout)     LayerNorm gamma (f32)
    b_ref : (1, 2Cout)     LayerNorm beta  (f32)
    o_ref : (th*Wh, 2Cout) output rows (lane-dense slab)
    """
    th, wh, c2in = xe_ref.shape
    rows = th * wh
    # Layout-preserving collapse of (th, Wh) onto the row axis (the last dim
    # stays on lanes; Wh is the full second-minor dim of the block).
    # TODO(synk): if Wp//2 is not a multiple of the sublane packing (8 f32 /
    # 16 bf16) this reshape may force a relayout; tile Wh in that case.
    xe = xe_ref[...].reshape(rows, c2in)
    xo = xo_ref[...].reshape(rows, c2in)

    # Native-dtype operands on the MXU, f32 accumulation.
    y = jnp.dot(xe, we_ref[...], preferred_element_type=jnp.float32)
    y = y + jnp.dot(xo, wo_ref[...], preferred_element_type=jnp.float32)

    # LayerNorm over the output-channel axis, in f32 (rsqrt -> EUP slot).
    inv_n = jnp.float32(1.0 / y.shape[-1])
    mean = jnp.sum(y, axis=-1, keepdims=True) * inv_n
    cen = y - mean
    var = jnp.sum(cen * cen, axis=-1, keepdims=True) * inv_n
    out = cen * jax.lax.rsqrt(var + LN_EPS) * g_ref[...] + b_ref[...]
    o_ref[...] = out.astype(o_ref.dtype)


def _pick_th(bhh, wh, c2in, c2out, x_itemsize, w_itemsize, block_rows):
    """Choose #merged-h rows per grid step (each contributes Wh output rows)."""
    # Bytes that scale with th: xe + xo input tiles and the output tile,
    # all double-buffered by the BlockSpec pipeline.
    per_th = 2 * wh * (2 * c2in + c2out) * x_itemsize
    # Resident bytes: both weight halves (double-buffered) + gamma/beta (f32).
    # TODO(synk): for very large `dim` the weights themselves exceed VMEM;
    # add a channel-tiled grid axis with a pl.when accumulator in that case.
    fixed = 4 * c2in * c2out * w_itemsize + 8 * c2out
    avail = _VMEM_BUDGET - fixed
    th_cap = max(1, avail // per_th) if avail > per_th else 1
    th = max(1, min(block_rows // max(wh, 1), th_cap, bhh))
    if th < bhh:
        # Keep tm = th*Wh a multiple of the sublane packing so the in-kernel
        # row collapse and the output store stay unmasked.
        sub = max(8, 32 // x_itemsize)            # f32: 8, bf16: 16, int8: 32
        step = sub // math.gcd(wh, sub)
        th = max(step, (th // step) * step)
        th = min(th, bhh)
    return th


def _fused_merge_reduce_norm(x4, w_even, w_odd, gamma, beta, *, block_rows):
    """x4: (B*Hh, 2, Wh, 2C) -> (B*Hh*Wh, 2Cout) fused merge + linear + LN."""
    bhh, _, wh, c2in = x4.shape
    c2out = w_even.shape[1]
    m_rows = bhh * wh

    th = _pick_th(bhh, wh, c2in, c2out, x4.dtype.itemsize,
                  w_even.dtype.itemsize, block_rows)
    tm = th * wh
    grid = (pl.cdiv(bhh, th),)  # masked tail, no divisibility requirement

    itemsize = x4.dtype.itemsize
    cost = pl.CostEstimate(
        flops=int(2 * m_rows * (2 * c2in) * c2out),
        transcendentals=int(m_rows),
        bytes_accessed=int(x4.size * itemsize + m_rows * c2out * itemsize
                           + 2 * c2in * c2out * w_even.dtype.itemsize),
    )

    return pl.pallas_call(
        _patch_merge_kernel,
        out_shape=jax.ShapeDtypeStruct((m_rows, c2out), x4.dtype),
        grid_spec=pltpu.PrefetchScalarGridSpec(
            num_scalar_prefetch=0,
            grid=grid,
            in_specs=[
                # even-h rows (parity 0): each (Wh, 2C) slab is [x0 | x2]
                pl.BlockSpec((th, pl.Squeezed(), wh, c2in),
                             lambda i: (i, 0, 0, 0)),
                # odd-h rows (parity 1): each (Wh, 2C) slab is [x1 | x3]
                pl.BlockSpec((th, pl.Squeezed(), wh, c2in),
                             lambda i: (i, 1, 0, 0)),
                pl.BlockSpec((c2in, c2out), lambda i: (0, 0)),  # w_even
                pl.BlockSpec((c2in, c2out), lambda i: (0, 0)),  # w_odd
                pl.BlockSpec((1, c2out), lambda i: (0, 0)),     # gamma (f32)
                pl.BlockSpec((1, c2out), lambda i: (0, 0)),     # beta  (f32)
            ],
            out_specs=pl.BlockSpec((tm, c2out), lambda i: (i, 0)),
        ),
        compiler_params=pltpu.CompilerParams(
            dimension_semantics=("parallel",),
            vmem_limit_bytes=_VMEM_LIMIT,
        ),
        cost_estimate=cost,
    )(x4, x4, w_even, w_odd, gamma, beta)


def patch_merging_forward(x, H, W, params, *, block_rows=1024):
    """JAX equivalent of PatchMerging.forward.

    x: (B, H*W, C)
    params: {'reduction_w': (2C, 4C) torch nn.Linear layout,
             'gamma': (2C,), 'beta': (2C,)}
    returns: (B, ceil(H/2)*ceil(W/2), 2C)
    """
    B, L, C = x.shape
    assert L == H * W, "input feature has wrong size"
    xi = x.reshape(B, H, W, C)

    pad_h, pad_w = H % 2, W % 2
    if pad_h or pad_w:
        xi = jnp.pad(xi, ((0, 0), (0, pad_h), (0, pad_w), (0, 0)))
    Hp, Wp = H + pad_h, W + pad_w
    Hh, Wh = Hp // 2, Wp // 2
    C2 = 2 * C

    # Free row-major view: dim order (b*hh, h-parity, wh, w-parity*c). The
    # gather into 2x2 neighborhoods is expressed purely by BlockSpec index maps.
    x4 = xi.reshape(B * Hh, 2, Wh, C2)

    # nn.Linear computes x @ W^T. Split W^T into the even/odd-h-row halves that
    # match the [x0|x2] / [x1|x3] memory order of x4, once, outside the kernel.
    wt = jnp.transpose(params["reduction_w"]).astype(x.dtype)        # (4C, 2C)
    w_even = jnp.concatenate([wt[0:C], wt[2 * C:3 * C]], axis=0)     # x0, x2
    w_odd = jnp.concatenate([wt[C:2 * C], wt[3 * C:4 * C]], axis=0)  # x1, x3
    gamma = params["gamma"].reshape(1, C2).astype(jnp.float32)
    beta = params["beta"].reshape(1, C2).astype(jnp.float32)

    out2d = _fused_merge_reduce_norm(
        x4, w_even, w_odd, gamma, beta, block_rows=block_rows)
    return out2d.reshape(B, Hh * Wh, C2)


def init_params(dim, key):
    """Deterministic synthetic parameters matching PatchMerging.__init__."""
    (k_w,) = jax.random.split(key, 1)
    reduction_w = (
        jax.random.normal(k_w, (2 * dim, 4 * dim), dtype=jnp.float32) * 0.02
    )
    gamma = jnp.ones((2 * dim,), dtype=jnp.float32)
    beta = jnp.zeros((2 * dim,), dtype=jnp.float32)
    return {"reduction_w": reduction_w, "gamma": gamma, "beta": beta}


def _reference_forward(x, H, W, params):
    """Pure-JAX reference (no Pallas), f32 math."""
    B, L, C = x.shape
    xf = x.astype(jnp.float32).reshape(B, H, W, C)
    pad_h, pad_w = H % 2, W % 2
    if pad_h or pad_w:
        xf = jnp.pad(xf, ((0, 0), (0, pad_h), (0, pad_w), (0, 0)))
    x0 = xf[:, 0::2, 0::2, :]
    x1 = xf[:, 1::2, 0::2, :]
    x2 = xf[:, 0::2, 1::2, :]
    x3 = xf[:, 1::2, 1::2, :]
    xm = jnp.concatenate([x0, x1, x2, x3], axis=-1).reshape(B, -1, 4 * C)
    y = xm @ params["reduction_w"].astype(jnp.float32).T
    mean = jnp.mean(y, axis=-1, keepdims=True)
    var = jnp.mean((y - mean) ** 2, axis=-1, keepdims=True)
    yn = (y - mean) / jnp.sqrt(var + LN_EPS)
    return yn * params["gamma"] + params["beta"]


if __name__ == "__main__":
    key = jax.random.PRNGKey(0)
    k1, k2, k3, k4, kp = jax.random.split(key, 5)

    # Case 1: f32, even spatial dims, multi-step grid (2C = 128 -> lane-dense).
    B, H, W, dim = 2, 16, 16, 64
    x = jax.random.normal(k1, (B, H * W, dim), dtype=jnp.float32)
    params = init_params(dim, kp)
    fwd = jax.jit(functools.partial(
        patch_merging_forward, H=H, W=W, block_rows=64))
    out = jax.block_until_ready(fwd(x, params=params))
    ref = _reference_forward(x, H, W, params)
    assert out.shape == (B, (H // 2) * (W // 2), 2 * dim), out.shape
    assert jnp.allclose(out, ref, atol=2e-4, rtol=2e-4), (
        float(jnp.max(jnp.abs(out - ref))))

    # Case 2: odd H -> exercises the F.pad path (single grid step, default tile).
    B2, H2, W2, dim2 = 1, 15, 16, 64
    x2 = jax.random.normal(k2, (B2, H2 * W2, dim2), dtype=jnp.float32)
    params2 = init_params(dim2, kp)
    out2 = jax.block_until_ready(
        jax.jit(functools.partial(patch_merging_forward, H=H2, W=W2))(
            x2, params=params2))
    ref2 = _reference_forward(x2, H2, W2, params2)
    assert out2.shape == (B2, ((H2 + 1) // 2) * (W2 // 2), 2 * dim2), out2.shape
    assert jnp.allclose(out2, ref2, atol=2e-4, rtol=2e-4), (
        float(jnp.max(jnp.abs(out2 - ref2))))

    # Case 3: bf16 operands on the MXU (no in-kernel up-cast), f32 LayerNorm.
    B3, H3, W3, dim3 = 2, 32, 32, 64
    x3 = jax.random.normal(
        k3, (B3, H3 * W3, dim3), dtype=jnp.float32).astype(jnp.bfloat16)
    params3 = init_params(dim3, kp)
    out3 = jax.block_until_ready(
        jax.jit(functools.partial(
            patch_merging_forward, H=H3, W=W3, block_rows=256))(
            x3, params=params3))
    params3_ref = dict(
        params3,
        reduction_w=params3["reduction_w"].astype(jnp.bfloat16).astype(
            jnp.float32))
    ref3 = _reference_forward(x3, H3, W3, params3_ref)
    assert out3.dtype == jnp.bfloat16
    assert jnp.allclose(out3.astype(jnp.float32), ref3, atol=3e-2, rtol=3e-2), (
        float(jnp.max(jnp.abs(out3.astype(jnp.float32) - ref3))))

    # Case 4: non-divisible row grid -> exercises the masked pl.cdiv tail
    # (bhh=5 merged rows, th=2 per step, grid=3, last block partially valid).
    B4, H4, W4, dim4 = 1, 10, 16, 64
    x4in = jax.random.normal(k4, (B4, H4 * W4, dim4), dtype=jnp.float32)
    params4 = init_params(dim4, kp)
    out4 = jax.block_until_ready(
        jax.jit(functools.partial(
            patch_merging_forward, H=H4, W=W4, block_rows=16))(
            x4in, params=params4))
    ref4 = _reference_forward(x4in, H4, W4, params4)
    assert out4.shape == (B4, (H4 // 2) * (W4 // 2), 2 * dim4), out4.shape
    assert jnp.allclose(out4, ref4, atol=2e-4, rtol=2e-4), (
        float(jnp.max(jnp.abs(out4 - ref4))))

    print("KERNEL_OK")
</pallas_src>

<mosaic_0001>
module attributes {stable_mosaic.version = 11 : i64} {
  func.func @_patch_merge_kernel(%arg0: i32, %arg1: memref<8x1x8x128xf32, #tpu.memory_space<vmem>>, %arg2: memref<8x1x8x128xf32, #tpu.memory_space<vmem>>, %arg3: memref<128x128xf32, #tpu.memory_space<vmem>>, %arg4: memref<128x128xf32, #tpu.memory_space<vmem>>, %arg5: memref<1x128xf32, #tpu.memory_space<vmem>>, %arg6: memref<1x128xf32, #tpu.memory_space<vmem>>, %arg7: memref<64x128xf32, #tpu.memory_space<vmem>>) attributes {dimension_semantics = [#tpu.dimension_semantics<parallel>], iteration_bounds = array<i64: 2>, scalar_prefetch = 0 : i64, scratch_operands = 0 : i64, tpu.core_type = #tpu.core_type<tc>, window_params = [{transform_indices = @transform_0, window_bounds = array<i64: 8, 1, 8, 128>}, {transform_indices = @transform_1, window_bounds = array<i64: 8, 1, 8, 128>}, {pipeline_mode = #tpu.pipeline_mode<synchronous>, transform_indices = @transform_2, window_bounds = array<i64: 128, 128>}, {pipeline_mode = #tpu.pipeline_mode<synchronous>, transform_indices = @transform_3, window_bounds = array<i64: 128, 128>}, {pipeline_mode = #tpu.pipeline_mode<synchronous>, transform_indices = @transform_4, window_bounds = array<i64: 1, 128>}, {pipeline_mode = #tpu.pipeline_mode<synchronous>, transform_indices = @transform_5, window_bounds = array<i64: 1, 128>}, {transform_indices = @transform_6, window_bounds = array<i64: 64, 128>}]} {
    %c0 = arith.constant 0 : index
    %c0_0 = arith.constant 0 : index
    %c0_1 = arith.constant 0 : index
    %c0_2 = arith.constant 0 : index
    %0 = vector.load %arg1[%c0, %c0_0, %c0_1, %c0_2] : memref<8x1x8x128xf32, #tpu.memory_space<vmem>>, vector<8x1x8x128xf32>
    %1 = vector.shape_cast %0 : vector<8x1x8x128xf32> to vector<8x8x128xf32>
    %2 = vector.shape_cast %1 : vector<8x8x128xf32> to vector<64x128xf32>
    %c0_3 = arith.constant 0 : index
    %c0_4 = arith.constant 0 : index
    %c0_5 = arith.constant 0 : index
    %c0_6 = arith.constant 0 : index
    %3 = vector.load %arg2[%c0_3, %c0_4, %c0_5, %c0_6] : memref<8x1x8x128xf32, #tpu.memory_space<vmem>>, vector<8x1x8x128xf32>
    %4 = vector.shape_cast %3 : vector<8x1x8x128xf32> to vector<8x8x128xf32>
    %5 = vector.shape_cast %4 : vector<8x8x128xf32> to vector<64x128xf32>
    %c0_7 = arith.constant 0 : index
    %c0_8 = arith.constant 0 : index
    %6 = vector.load %arg3[%c0_7, %c0_8] : memref<128x128xf32, #tpu.memory_space<vmem>>, vector<128x128xf32>
    %cst = arith.constant dense<0.000000e+00> : vector<64x128xf32>
    %7 = tpu.matmul %2, %6, %cst {dimension_numbers = #tpu.dot_dimension_numbers<[1], [0], [0], [1], [0, 0, 1, 1], [], []>} : vector<64x128xf32>, vector<128x128xf32>, vector<64x128xf32> -> vector<64x128xf32>
    %c0_9 = arith.constant 0 : index
    %c0_10 = arith.constant 0 : index
    %8 = vector.load %arg4[%c0_9, %c0_10] : memref<128x128xf32, #tpu.memory_space<vmem>>, vector<128x128xf32>
    %cst_11 = arith.constant dense<0.000000e+00> : vector<64x128xf32>
    %9 = tpu.matmul %5, %8, %cst_11 {dimension_numbers = #tpu.dot_dimension_numbers<[1], [0], [0], [1], [0, 0, 1, 1], [], []>} : vector<64x128xf32>, vector<128x128xf32>, vector<64x128xf32> -> vector<64x128xf32>
    %10 = arith.addf %7, %9 : vector<64x128xf32>
    %cst_12 = arith.constant dense<0.000000e+00> : vector<64xf32>
    %11 = vector.multi_reduction <add>, %10, %cst_12 [1] : vector<64x128xf32> to vector<64xf32>
    %12 = vector.shape_cast %11 : vector<64xf32> to vector<64x1xf32>
    %cst_13 = arith.constant 7.812500e-03 : f32
    %13 = vector.broadcast %cst_13 : f32 to vector<64x1xf32>
    %14 = arith.mulf %12, %13 : vector<64x1xf32>
    %15 = vector.broadcast %14 : vector<64x1xf32> to vector<64x128xf32>
    %16 = arith.subf %10, %15 : vector<64x128xf32>
    %17 = arith.mulf %16, %16 : vector<64x128xf32>
    %cst_14 = arith.constant dense<0.000000e+00> : vector<64xf32>
    %18 = vector.multi_reduction <add>, %17, %cst_14 [1] : vector<64x128xf32> to vector<64xf32>
    %19 = vector.shape_cast %18 : vector<64xf32> to vector<64x1xf32>
    %cst_15 = arith.constant 7.812500e-03 : f32
    %20 = vector.broadcast %cst_15 : f32 to vector<64x1xf32>
    %21 = arith.mulf %19, %20 : vector<64x1xf32>
    %cst_16 = arith.constant 9.99999974E-6 : f32
    %22 = vector.broadcast %cst_16 : f32 to vector<64x1xf32>
    %23 = arith.addf %21, %22 : vector<64x1xf32>
    %24 = math.rsqrt %23 : vector<64x1xf32>
    %25 = vector.broadcast %24 : vector<64x1xf32> to vector<64x128xf32>
    %26 = arith.mulf %16, %25 : vector<64x128xf32>
    %c0_17 = arith.constant 0 : index
    %c0_18 = arith.constant 0 : index
    %27 = vector.load %arg5[%c0_17, %c0_18] : memref<1x128xf32, #tpu.memory_space<vmem>>, vector<1x128xf32>
    %28 = vector.broadcast %27 : vector<1x128xf32> to vector<64x128xf32>
    %29 = arith.mulf %26, %28 : vector<64x128xf32>
    %c0_19 = arith.constant 0 : index
    %c0_20 = arith.constant 0 : index
    %30 = vector.load %arg6[%c0_19, %c0_20] : memref<1x128xf32, #tpu.memory_space<vmem>>, vector<1x128xf32>
    %31 = vector.broadcast %30 : vector<1x128xf32> to vector<64x128xf32>
    %32 = arith.addf %29, %31 : vector<64x128xf32>
    %c0_21 = arith.constant 0 : index
    %c0_22 = arith.constant 0 : index
    %33 = vector.load %arg7[%c0_21, %c0_22] : memref<64x128xf32, #tpu.memory_space<vmem>>, vector<64x128xf32>
    tpu.vector_store %arg7[%c0_21, %c0_22], %32 {strides = array<i32>} : memref<64x128xf32, #tpu.memory_space<vmem>>, vector<64x128xf32>,
    return
  }
  func.func @transform_0(%arg0: i32) -> (i32, i32, i32, i32) {
    %c0_i32 = arith.constant 0 : i32
    %c0_i32_0 = arith.constant 0 : i32
    %c0_i32_1 = arith.constant 0 : i32
    %c0_i32_2 = arith.constant 0 : i32
    return %arg0, %c0_i32, %c0_i32_0, %c0_i32_1 : i32, i32, i32, i32
  }
  func.func @transform_1(%arg0: i32) -> (i32, i32, i32, i32) {
    %c1_i32 = arith.constant 1 : i32
    %c0_i32 = arith.constant 0 : i32
    %c0_i32_0 = arith.constant 0 : i32
    %c0_i32_1 = arith.constant 0 : i32
    return %arg0, %c1_i32, %c0_i32, %c0_i32_0 : i32, i32, i32, i32
  }
  func.func @transform_2(%arg0: i32) -> (i32, i32) {
    %c0_i32 = arith.constant 0 : i32
    %c0_i32_0 = arith.constant 0 : i32
    %c0_i32_1 = arith.constant 0 : i32
    return %c0_i32, %c0_i32_0 : i32, i32
  }
  func.func @transform_3(%arg0: i32) -> (i32, i32) {
    %c0_i32 = arith.constant 0 : i32
    %c0_i32_0 = arith.constant 0 : i32
    %c0_i32_1 = arith.constant 0 : i32
    return %c0_i32, %c0_i32_0 : i32, i32
  }
  func.func @transform_4(%arg0: i32) -> (i32, i32) {
    %c0_i32 = arith.constant 0 : i32
    %c0_i32_0 = arith.constant 0 : i32
    %c0_i32_1 = arith.constant 0 : i32
    return %c0_i32, %c0_i32_0 : i32, i32
  }
  func.func @transform_5(%arg0: i32) -> (i32, i32) {
    %c0_i32 = arith.constant 0 : i32
    %c0_i32_0 = arith.constant 0 : i32
    %c0_i32_1 = arith.constant 0 : i32
    return %c0_i32, %c0_i32_0 : i32, i32
  }
  func.func @transform_6(%arg0: i32) -> (i32, i32) {
    %c0_i32 = arith.constant 0 : i32
    %c0_i32_0 = arith.constant 0 : i32
    return %arg0, %c0_i32 : i32, i32
  }
}

</mosaic_0001>

<llo_original>
// kernel: patch_merging_forward.1
$region0: #{patch_merging_forward.1}
  #allocation0 [shape = 'u32[]', space=smem, size = 0x4, offset = 0x4, fixed_abs, tag = 'smem constant byte address 0x4 - core index']
  #allocation1 [shape = 'u32[72,128]{1,0:T(1,128)}', space=vmem, size = 0x9000, scoped, tag = 'internal scratch']
  %s0 = inlined_call_operand.vmem [shape: f32[16,2,8,128], index: 0, kind: input, shape index: {}, may-alias: {0,1}]
  %s1 = inlined_call_operand.vmem [shape: f32[16,2,8,128], index: 1, kind: input, shape index: {}, may-alias: {0,1}]
  %s2 = inlined_call_operand.vmem [shape: f32[128,128], index: 2, kind: input, shape index: {}]
  %s3 = inlined_call_operand.vmem [shape: f32[128,128], index: 3, kind: input, shape index: {}]
  %s4 = inlined_call_operand.vmem [shape: f32[1,128], index: 4, kind: input, shape index: {}]
  %s5 = inlined_call_operand.vmem [shape: f32[1,128], index: 5, kind: input, shape index: {}]
  %s6 = inlined_call_operand.hbm [shape: f32[128,128], index: 6, kind: output, shape index: {}]
  %s7 = sld [smem:[#allocation0]]
  $region133: #{patch_merging_forward.1} parent=0
    _
  %s9 = ssub.s32 1, %s7
  %s10 = scalar_select 0, %s9, %s7
  $region1: #{patch_merging_forward.1} parent=0
    #allocation2 [shape = 'u8[65536]{0}', space=vmem, size = 0x10000, scoped, tag = 'input window, operand 0']
    #allocation3 [shape = 'u8[65536]{0}', space=vmem, size = 0x10000, scoped, tag = 'input window, operand 1']
    #allocation4 [shape = 'u8[65536]{0}', space=vmem, size = 0x10000, scoped, tag = 'output window, operand 0']
    #allocation5 [shape = 's32[2]{0}', space=sflag, size = 0x8, scoped, tag = 'scoped memory for patch_merging_forward.1']
    %11 = vsyncpa [#allocation5], 0
    %s12 = scalar_lea.sflag [#allocation5], 1
    %13 = vsyncpa %s12, 0
    loop: start=0, step=1, limit=4
    $region2: #{patch_merging_forward.1} parent=1 // loop_pre_header
      _
    $region3: #{patch_merging_forward.1} parent=1 // loop_header
      %s15 = sphi 0, %s19
      %p16 = scmp.ge.s32.totalorder %s15, 4
      %s25 = sphi 0, %s27
      %s28 = sphi 0, %s25
      %s29 = sphi 0, %s28
      %s45 = sphi 0, %s29
      %s51 = sphi 0, %s53
      %s54 = sphi 0, %s51
      %s55 = sphi 0, %s54
      %s71 = sphi 0, %s55
      %s75 = sphi 0, %s75
      %s77 = sphi 0, %s75
      %s78 = sphi 0, %s77
      %s92 = sphi 0, %s78
      %s96 = sphi 0, %s96
      %s98 = sphi 0, %s96
      %s99 = sphi 0, %s98
      %s113 = sphi 0, %s99
      %s117 = sphi 0, %s117
      %s119 = sphi 0, %s117
      %s120 = sphi 0, %s119
      %s134 = sphi 0, %s120
      %s138 = sphi 0, %s138
      %s140 = sphi 0, %s138
      %s141 = sphi 0, %s140
      %s155 = sphi 0, %s141
      %s161 = sphi 0, %s163
      %s164 = sphi 0, %s161
      %s165 = sphi 0, %s164
      %s181 = sphi 0, %s165
    $region4: #{patch_merging_forward.1} parent=1 // loop_header_branch
      %18 = sbr.rel (%p16) target = $region8
    $region5: #{patch_merging_forward.1} parent=1 // loop_body
      %s20 = ssub.s32 %s15, 1
      %s21 = ssub.s32 %s15, 2
      %s22 = sadd.s32 %s15, 1
      %s23 = ssub.s32 %s15, %s22
      %p24 = scmp.eq.s32.totalorder %s23, 0
      %s26 = sadd.s32 %s25, 1
      %s27 = scalar_select %p24, %s25, %s26
      %p30 = pneg %p24
      %p31 = scmp.eq.s32.totalorder %s15, 1
      %p32 = por %p30, %p31
      %p33 = scmp.ne.s32.totalorder %s25, %s28
      %p34 = scmp.eq.s32.totalorder %s15, 0
      %p35 = por %p33, %p34
      %p36 = scmp.ne.s32.totalorder %s25, %s28
      %p37 = scmp.eq.s32.totalorder %s20, 1
      %p38 = por %p36, %p37
      %p39 = scmp.ne.s32.totalorder %s28, %s29
      %p40 = scmp.eq.s32.totalorder %s20, 0
      %p41 = por %p39, %p40
      %p42 = scmp.ne.s32.totalorder %s28, %s29
      %p43 = scmp.eq.s32.totalorder %s21, 1
      %p44 = por %p42, %p43
      %p46 = scmp.ne.s32.totalorder %s29, %s45
      %p47 = scmp.eq.s32.totalorder %s21, 0
      %p48 = por %p46, %p47
      %s49 = ssub.s32 %s15, %s22
      %p50 = scmp.eq.s32.totalorder %s49, 0
      %s52 = sadd.s32 %s51, 1
      %s53 = scalar_select %p50, %s51, %s52
      %p56 = pneg %p50
      %p57 = scmp.eq.s32.totalorder %s15, 1
      %p58 = por %p56, %p57
      %p59 = scmp.ne.s32.totalorder %s51, %s54
      %p60 = scmp.eq.s32.totalorder %s15, 0
      %p61 = por %p59, %p60
      %p62 = scmp.ne.s32.totalorder %s51, %s54
      %p63 = scmp.eq.s32.totalorder %s20, 1
      %p64 = por %p62, %p63
      %p65 = scmp.ne.s32.totalorder %s54, %s55
      %p66 = scmp.eq.s32.totalorder %s20, 0
      %p67 = por %p65, %p66
      %p68 = scmp.ne.s32.totalorder %s54, %s55
      %p69 = scmp.eq.s32.totalorder %s21, 1
      %p70 = por %p68, %p69
      %p72 = scmp.ne.s32.totalorder %s55, %s71
      %p73 = scmp.eq.s32.totalorder %s21, 0
      %p74 = por %p72, %p73
      %s76 = sadd.s32 %s75, 1
      %p79 = scmp.eq.s32.totalorder %s15, 1
      %p80 = scmp.ne.s32.totalorder %s75, %s77
      %p81 = scmp.eq.s32.totalorder %s15, 0
      %p82 = por %p80, %p81
      %p83 = scmp.ne.s32.totalorder %s75, %s77
      %p84 = scmp.eq.s32.totalorder %s20, 1
      %p85 = por %p83, %p84
      %p86 = scmp.ne.s32.totalorder %s77, %s78
      %p87 = scmp.eq.s32.totalorder %s20, 0
      %p88 = por %p86, %p87
      %p89 = scmp.ne.s32.totalorder %s77, %s78
      %p90 = scmp.eq.s32.totalorder %s21, 1
      %p91 = por %p89, %p90
      %p93 = scmp.ne.s32.totalorder %s78, %s92
      %p94 = scmp.eq.s32.totalorder %s21, 0
      %p95 = por %p93, %p94
      %s97 = sadd.s32 %s96, 1
      %p100 = scmp.eq.s32.totalorder %s15, 1
      %p101 = scmp.ne.s32.totalorder %s96, %s98
      %p102 = scmp.eq.s32.totalorder %s15, 0
      %p103 = por %p101, %p102
      %p104 = scmp.ne.s32.totalorder %s96, %s98
      %p105 = scmp.eq.s32.totalorder %s20, 1
      %p106 = por %p104, %p105
      %p107 = scmp.ne.s32.totalorder %s98, %s99
      %p108 = scmp.eq.s32.totalorder %s20, 0
      %p109 = por %p107, %p108
      %p110 = scmp.ne.s32.totalorder %s98, %s99
      %p111 = scmp.eq.s32.totalorder %s21, 1
      %p112 = por %p110, %p111
      %p114 = scmp.ne.s32.totalorder %s99, %s113
      %p115 = scmp.eq.s32.totalorder %s21, 0
      %p116 = por %p114, %p115
      %s118 = sadd.s32 %s117, 1
      %p121 = scmp.eq.s32.totalorder %s15, 1
      %p122 = scmp.ne.s32.totalorder %s117, %s119
      %p123 = scmp.eq.s32.totalorder %s15, 0
      %p124 = por %p122, %p123
      %p125 = scmp.ne.s32.totalorder %s117, %s119
      %p126 = scmp.eq.s32.totalorder %s20, 1
      %p127 = por %p125, %p126
      %p128 = scmp.ne.s32.totalorder %s119, %s120
      %p129 = scmp.eq.s32.totalorder %s20, 0
      %p130 = por %p128, %p129
      %p131 = scmp.ne.s32.totalorder %s119, %s120
      %p132 = scmp.eq.s32.totalorder %s21, 1
      %p133 = por %p131, %p132
      %p135 = scmp.ne.s32.totalorder %s120, %s134
      %p136 = scmp.eq.s32.totalorder %s21, 0
      %p137 = por %p135, %p136
      %s139 = sadd.s32 %s138, 1
      %p142 = scmp.eq.s32.totalorder %s15, 1
      %p143 = scmp.ne.s32.totalorder %s138, %s140
      %p144 = scmp.eq.s32.totalorder %s15, 0
      %p145 = por %p143, %p144
      %p146 = scmp.ne.s32.totalorder %s138, %s140
      %p147 = scmp.eq.s32.totalorder %s20, 1
      %p148 = por %p146, %p147
      %p149 = scmp.ne.s32.totalorder %s140, %s141
      %p150 = scmp.eq.s32.totalorder %s20, 0
      %p151 = por %p149, %p150
      %p152 = scmp.ne.s32.totalorder %s140, %s141
      %p153 = scmp.eq.s32.totalorder %s21, 1
      %p154 = por %p152, %p153
      %p156 = scmp.ne.s32.totalorder %s141, %s155
      %p157 = scmp.eq.s32.totalorder %s21, 0
      %p158 = por %p156, %p157
      %s159 = ssub.s32 %s15, %s22
      %p160 = scmp.eq.s32.totalorder %s159, 0
      %s162 = sadd.s32 %s161, 1
      %s163 = scalar_select %p160, %s161, %s162
      %p166 = pneg %p160
      %p167 = scmp.eq.s32.totalorder %s15, 1
      %p168 = por %p166, %p167
      %p169 = scmp.ne.s32.totalorder %s161, %s164
      %p170 = scmp.eq.s32.totalorder %s15, 0
      %p171 = por %p169, %p170
      %p172 = scmp.ne.s32.totalorder %s161, %s164
      %p173 = scmp.eq.s32.totalorder %s20, 1
      %p174 = por %p172, %p173
      %p175 = scmp.ne.s32.totalorder %s164, %s165
      %p176 = scmp.eq.s32.totalorder %s20, 0
      %p177 = por %p175, %p176
      %p178 = scmp.ne.s32.totalorder %s164, %s165
      %p179 = scmp.eq.s32.totalorder %s21, 1
      %p180 = por %p178, %p179
      %p182 = scmp.ne.s32.totalorder %s165, %s181
      %p183 = scmp.eq.s32.totalorder %s21, 0
      %p184 = por %p182, %p183
      %p185 = scmp.le.s32.totalorder 1, %s15
      %p186 = scmp.lt.s32.totalorder %s15, 3
      %p187 = pnand %p185, %p186
      %p188 = pneg %p187
      // Predicated region
      $region9: #{patch_merging_forward.1} parent=5 // pred_check
        _
      $region10: #{patch_merging_forward.1} parent=5 // pred_check_branch
        %190 = sbr.rel (%p187) target = $region12
      $region11: #{patch_merging_forward.1} parent=5 // pred_region
        %s191 = ssub.s32 %s15, 1
        // Predicated region
        $region13: #{patch_merging_forward.1} parent=11 // pred_check
          %p192 = pneg %p88
        $region14: #{patch_merging_forward.1} parent=11 // pred_check_branch
          %194 = sbr.rel (%p192) target = $region16
        $region15: #{patch_merging_forward.1} parent=11 // pred_region
          _
        $region16: #{patch_merging_forward.1} parent=11 // pred_fallthru
          _
        // Predicated region
        $region17: #{patch_merging_forward.1} parent=11 // pred_check
          %p195 = pneg %p109
        $region18: #{patch_merging_forward.1} parent=11 // pred_check_branch
          %197 = sbr.rel (%p195) target = $region20
        $region19: #{patch_merging_forward.1} parent=11 // pred_region
          _
        $region20: #{patch_merging_forward.1} parent=11 // pred_fallthru
          _
        // Predicated region
        $region21: #{patch_merging_forward.1} parent=11 // pred_check
          %p198 = pneg %p130
        $region22: #{patch_merging_forward.1} parent=11 // pred_check_branch
          %200 = sbr.rel (%p198) target = $region24
        $region23: #{patch_merging_forward.1} parent=11 // pred_region
          _
        $region24: #{patch_merging_forward.1} parent=11 // pred_fallthru
          _
        // Predicated region
        $region25: #{patch_merging_forward.1} parent=11 // pred_check
          %p201 = pneg %p151
        $region26: #{patch_merging_forward.1} parent=11 // pred_check_branch
          %203 = sbr.rel (%p201) target = $region28
        $region27: #{patch_merging_forward.1} parent=11 // pred_region
          _
        $region28: #{patch_merging_forward.1} parent=11 // pred_fallthru
          _
      $region12: #{patch_merging_forward.1} parent=5 // pred_fallthru
        _
      %p204 = scmp.lt.s32.totalorder %s15, 2
      // Predicated region
      $region29: #{patch_merging_forward.1} parent=5 // pred_check
        %p205 = pneg %p204
      $region30: #{patch_merging_forward.1} parent=5 // pred_check_branch
        %207 = sbr.rel (%p205) target = $region32
      $region31: #{patch_merging_forward.1} parent=5 // pred_region
        // Predicated region
        $region33: #{patch_merging_forward.1} parent=31 // pred_check
          %p208 = pneg %p35
        $region34: #{patch_merging_forward.1} parent=31 // pred_check_branch
          %210 = sbr.rel (%p208) target = $region36
        $region35: #{patch_merging_forward.1} parent=31 // pred_region
          %s211 = sand.u32 %s25, 1
          %s212 = sand.u32 %s25, 1
          %s213 = smul.addr %s212, 64
          %s214 = scalar_lea.vmem [#allocation2], %s213
          %s215 = smul.u32 8, %s15
          %s216 = smul.addr %s215, 2
          %s217 = smul.addr %s216, 8
          %s218 = scalar_lea.vmem %s0, %s217
          // Predicated region
          $region37: #{patch_merging_forward.1} parent=35 // pred_check
            _
          $region38: #{patch_merging_forward.1} parent=35 // pred_check_branch
            %220 = sbr.rel (0) target = $region40
          $region39: #{patch_merging_forward.1} parent=35 // pred_region
            // Predicated region
            $region41: #{patch_merging_forward.1} parent=39 // pred_check
              _
            $region42: #{patch_merging_forward.1} parent=39 // pred_check_branch
              %222 = sbr.rel (0) target = $region44
            $region43: #{patch_merging_forward.1} parent=39 // pred_region
              // Predicated region
              $region56: #{patch_merging_forward.1} parent=43 // pred_check
                _
              $region57: #{patch_merging_forward.1} parent=43 // pred_check_branch
                %252 = sbr.rel (0) target = $region59
              $region58: #{patch_merging_forward.1} parent=43 // pred_region
                loop: start=0, step=1, limit=1
                $region60: #{patch_merging_forward.1} parent=58 // loop_pre_header
                  _
                $region61: #{patch_merging_forward.1} parent=58 // loop_header
                  %s254 = sphi 0, %s258
                  %p255 = scmp.ge.s32.totalorder %s254, 1
                  %s259 = sphi %s218, %s218
                  %s260 = sphi %s214, %s214
                $region62: #{patch_merging_forward.1} parent=58 // loop_header_branch
                  %257 = sbr.rel (%p255) target = $region66
                $region63: #{patch_merging_forward.1} parent=58 // loop_body
                  %v261 = vld [vmem:[%s259] sm:$0xff]
                  %262 = vst [vmem:[%s260] sm:$0xff] %v261
                  %v263 = vld [vmem:[%s259 + $0x10] sm:$0xff]
                  %264 = vst [vmem:[%s260 + $0x8] sm:$0xff] %v263
                  %v265 = vld [vmem:[%s259 + $0x20] sm:$0xff]
                  %266 = vst [vmem:[%s260 + $0x10] sm:$0xff] %v265
                  %v267 = vld [vmem:[%s259 + $0x30] sm:$0xff]
                  %268 = vst [vmem:[%s260 + $0x18] sm:$0xff] %v267
                  %v269 = vld [vmem:[%s259 + $0x40] sm:$0xff]
                  %270 = vst [vmem:[%s260 + $0x20] sm:$0xff] %v269
                  %v271 = vld [vmem:[%s259 + $0x50] sm:$0xff]
                  %272 = vst [vmem:[%s260 + $0x28] sm:$0xff] %v271
                  %v273 = vld [vmem:[%s259 + $0x60] sm:$0xff]
                  %274 = vst [vmem:[%s260 + $0x30] sm:$0xff] %v273
                  %v275 = vld [vmem:[%s259 + $0x70] sm:$0xff]
                  %276 = vst [vmem:[%s260 + $0x38] sm:$0xff] %v275
                $region64: #{patch_merging_forward.1} parent=58 // loop_footer
                  %s258 = sadd.s32 1, %s254
                $region65: #{patch_merging_forward.1} parent=58 // loop_footer_branch
                  %253 = sbr.rel target = $region61
                $region66: #{patch_merging_forward.1} parent=58 // loop_exit
                  _
              $region59: #{patch_merging_forward.1} parent=43 // pred_fallthru
                _
              // Predicated region
              $region67: #{patch_merging_forward.1} parent=43 // pred_check
                _
              $region68: #{patch_merging_forward.1} parent=43 // pred_check_branch
                %278 = sbr.rel target = $region70
              $region69: #{patch_merging_forward.1} parent=43 // pred_region
                _
              $region70: #{patch_merging_forward.1} parent=43 // pred_fallthru
                _
            $region44: #{patch_merging_forward.1} parent=39 // pred_fallthru
              _
            // Predicated region
            $region45: #{patch_merging_forward.1} parent=39 // pred_check
              _
            $region46: #{patch_merging_forward.1} parent=39 // pred_check_branch
              %224 = sbr.rel target = $region48
            $region47: #{patch_merging_forward.1} parent=39 // pred_region
              %s226 = ssub.s32 256, 1
              loop: start=0, step=1, limit=1
              $region49: #{patch_merging_forward.1} parent=47 // loop_pre_header
                _
              $region50: #{patch_merging_forward.1} parent=47 // loop_header
                %s228 = sphi 0, %s232
                %p229 = scmp.ge.s32.totalorder %s228, 1
                %s233 = sphi %s218, %s218
                %s234 = sphi %s214, %s214
              $region51: #{patch_merging_forward.1} parent=47 // loop_header_branch
                %231 = sbr.rel (%p229) target = $region55
              $region52: #{patch_merging_forward.1} parent=47 // loop_body
                %v235 = vld [vmem:[%s233] sm:%s226]
                %236 = vst [vmem:[%s234] sm:%s226] %v235
                %v237 = vld [vmem:[%s233 + $0x10] sm:%s226]
                %238 = vst [vmem:[%s234 + $0x8] sm:%s226] %v237
                %v239 = vld [vmem:[%s233 + $0x20] sm:%s226]
                %240 = vst [vmem:[%s234 + $0x10] sm:%s226] %v239
                %v241 = vld [vmem:[%s233 + $0x30] sm:%s226]
                %242 = vst [vmem:[%s234 + $0x18] sm:%s226] %v241
                %v243 = vld [vmem:[%s233 + $0x40] sm:%s226]
                %244 = vst [vmem:[%s234 + $0x20] sm:%s226] %v243
                %v245 = vld [vmem:[%s233 + $0x50] sm:%s226]
                %246 = vst [vmem:[%s234 + $0x28] sm:%s226] %v245
                %v247 = vld [vmem:[%s233 + $0x60] sm:%s226]
                %248 = vst [vmem:[%s234 + $0x30] sm:%s226] %v247
                %v249 = vld [vmem:[%s233 + $0x70] sm:%s226]
                %250 = vst [vmem:[%s234 + $0x38] sm:%s226] %v249
              $region53: #{patch_merging_forward.1} parent=47 // loop_footer
                %s232 = sadd.s32 1, %s228
              $region54: #{patch_merging_forward.1} parent=47 // loop_footer_branch
                %227 = sbr.rel target = $region50
              $region55: #{patch_merging_forward.1} parent=47 // loop_exit
                _
            $region48: #{patch_merging_forward.1} parent=39 // pred_fallthru
              _
          $region40: #{patch_merging_forward.1} parent=35 // pred_fallthru
            _
          %279 = vnop
        $region36: #{patch_merging_forward.1} parent=31 // pred_fallthru
          _
        // Predicated region
        $region71: #{patch_merging_forward.1} parent=31 // pred_check
          %p280 = pneg %p61
        $region72: #{patch_merging_forward.1} parent=31 // pred_check_branch
          %282 = sbr.rel (%p280) target = $region74
        $region73: #{patch_merging_forward.1} parent=31 // pred_region
          %s283 = sand.u32 %s51, 1
          %s284 = sand.u32 %s51, 1
          %s285 = smul.addr %s284, 64
          %s286 = scalar_lea.vmem [#allocation3], %s285
          %s287 = smul.u32 8, %s15
          %s288 = smul.addr %s287, 2
          %s289 = sadd.s32 1, %s288
          %s290 = smul.addr %s289, 8
          %s291 = scalar_lea.vmem %s1, %s290
          // Predicated region
          $region75: #{patch_merging_forward.1} parent=73 // pred_check
            _
          $region76: #{patch_merging_forward.1} parent=73 // pred_check_branch
            %293 = sbr.rel (0) target = $region78
          $region77: #{patch_merging_forward.1} parent=73 // pred_region
            // Predicated region
            $region79: #{patch_merging_forward.1} parent=77 // pred_check
              _
            $region80: #{patch_merging_forward.1} parent=77 // pred_check_branch
              %295 = sbr.rel (0) target = $region82
            $region81: #{patch_merging_forward.1} parent=77 // pred_region
              // Predicated region
              $region94: #{patch_merging_forward.1} parent=81 // pred_check
                _
              $region95: #{patch_merging_forward.1} parent=81 // pred_check_branch
                %325 = sbr.rel (0) target = $region97
              $region96: #{patch_merging_forward.1} parent=81 // pred_region
                loop: start=0, step=1, limit=1
                $region98: #{patch_merging_forward.1} parent=96 // loop_pre_header
                  _
                $region99: #{patch_merging_forward.1} parent=96 // loop_header
                  %s327 = sphi 0, %s331
                  %p328 = scmp.ge.s32.totalorder %s327, 1
                  %s332 = sphi %s291, %s291
                  %s333 = sphi %s286, %s286
                $region100: #{patch_merging_forward.1} parent=96 // loop_header_branch
                  %330 = sbr.rel (%p328) target = $region104
                $region101: #{patch_merging_forward.1} parent=96 // loop_body
                  %v334 = vld [vmem:[%s332] sm:$0xff]
                  %335 = vst [vmem:[%s333] sm:$0xff] %v334
                  %v336 = vld [vmem:[%s332 + $0x10] sm:$0xff]
                  %337 = vst [vmem:[%s333 + $0x8] sm:$0xff] %v336
                  %v338 = vld [vmem:[%s332 + $0x20] sm:$0xff]
                  %339 = vst [vmem:[%s333 + $0x10] sm:$0xff] %v338
                  %v340 = vld [vmem:[%s332 + $0x30] sm:$0xff]
                  %341 = vst [vmem:[%s333 + $0x18] sm:$0xff] %v340
                  %v342 = vld [vmem:[%s332 + $0x40] sm:$0xff]
                  %343 = vst [vmem:[%s333 + $0x20] sm:$0xff] %v342
                  %v344 = vld [vmem:[%s332 + $0x50] sm:$0xff]
                  %345 = vst [vmem:[%s333 + $0x28] sm:$0xff] %v344
                  %v346 = vld [vmem:[%s332 + $0x60] sm:$0xff]
                  %347 = vst [vmem:[%s333 + $0x30] sm:$0xff] %v346
                  %v348 = vld [vmem:[%s332 + $0x70] sm:$0xff]
                  %349 = vst [vmem:[%s333 + $0x38] sm:$0xff] %v348
                $region102: #{patch_merging_forward.1} parent=96 // loop_footer
                  %s331 = sadd.s32 1, %s327
                $region103: #{patch_merging_forward.1} parent=96 // loop_footer_branch
                  %326 = sbr.rel target = $region99
                $region104: #{patch_merging_forward.1} parent=96 // loop_exit
                  _
              $region97: #{patch_merging_forward.1} parent=81 // pred_fallthru
                _
              // Predicated region
              $region105: #{patch_merging_forward.1} parent=81 // pred_check
                _
              $region106: #{patch_merging_forward.1} parent=81 // pred_check_branch
                %351 = sbr.rel target = $region108
              $region107: #{patch_merging_forward.1} parent=81 // pred_region
                _
              $region108: #{patch_merging_forward.1} parent=81 // pred_fallthru
                _
            $region82: #{patch_merging_forward.1} parent=77 // pred_fallthru
              _
            // Predicated region
            $region83: #{patch_merging_forward.1} parent=77 // pred_check
              _
            $region84: #{patch_merging_forward.1} parent=77 // pred_check_branch
              %297 = sbr.rel target = $region86
            $region85: #{patch_merging_forward.1} parent=77 // pred_region
              %s299 = ssub.s32 256, 1
              loop: start=0, step=1, limit=1
              $region87: #{patch_merging_forward.1} parent=85 // loop_pre_header
                _
              $region88: #{patch_merging_forward.1} parent=85 // loop_header
                %s301 = sphi 0, %s305
                %p302 = scmp.ge.s32.totalorder %s301, 1
                %s306 = sphi %s291, %s291
                %s307 = sphi %s286, %s286
              $region89: #{patch_merging_forward.1} parent=85 // loop_header_branch
                %304 = sbr.rel (%p302) target = $region93
              $region90: #{patch_merging_forward.1} parent=85 // loop_body
                %v308 = vld [vmem:[%s306] sm:%s299]
                %309 = vst [vmem:[%s307] sm:%s299] %v308
                %v310 = vld [vmem:[%s306 + $0x10] sm:%s299]
                %311 = vst [vmem:[%s307 + $0x8] sm:%s299] %v310
                %v312 = vld [vmem:[%s306 + $0x20] sm:%s299]
                %313 = vst [vmem:[%s307 + $0x10] sm:%s299] %v312
                %v314 = vld [vmem:[%s306 + $0x30] sm:%s299]
                %315 = vst [vmem:[%s307 + $0x18] sm:%s299] %v314
                %v316 = vld [vmem:[%s306 + $0x40] sm:%s299]
                %317 = vst [vmem:[%s307 + $0x20] sm:%s299] %v316
                %v318 = vld [vmem:[%s306 + $0x50] sm:%s299]
                %319 = vst [vmem:[%s307 + $0x28] sm:%s299] %v318
                %v320 = vld [vmem:[%s306 + $0x60] sm:%s299]
                %321 = vst [vmem:[%s307 + $0x30] sm:%s299] %v320
                %v322 = vld [vmem:[%s306 + $0x70] sm:%s299]
                %323 = vst [vmem:[%s307 + $0x38] sm:%s299] %v322
              $region91: #{patch_merging_forward.1} parent=85 // loop_footer
                %s305 = sadd.s32 1, %s301
              $region92: #{patch_merging_forward.1} parent=85 // loop_footer_branch
                %300 = sbr.rel target = $region88
              $region93: #{patch_merging_forward.1} parent=85 // loop_exit
                _
            $region86: #{patch_merging_forward.1} parent=77 // pred_fallthru
              _
          $region78: #{patch_merging_forward.1} parent=73 // pred_fallthru
            _
          %352 = vnop
        $region74: #{patch_merging_forward.1} parent=31 // pred_fallthru
          _
      $region32: #{patch_merging_forward.1} parent=5 // pred_fallthru
        _
      %p353 = scmp.le.s32.totalorder 1, %s15
      %p354 = scmp.lt.s32.totalorder %s15, 3
      %p355 = pnand %p353, %p354
      %p356 = pneg %p355
      // Predicated region
      $region109: #{patch_merging_forward.1} parent=5 // pred_check
        _
      $region110: #{patch_merging_forward.1} parent=5 // pred_check_branch
        %358 = sbr.rel (%p355) target = $region112
      $region111: #{patch_merging_forward.1} parent=5 // pred_region
        %s359 = ssub.s32 %s15, 1
        %s360 = sand.u32 %s28, 1
        %s361 = sand.u32 %s28, 1
        %s362 = smul.addr %s361, 64
        %s363 = scalar_lea.vmem [#allocation2], %s362
        // Predicated region
        $region113: #{patch_merging_forward.1} parent=111 // pred_check
          %p364 = pneg %p41
        $region114: #{patch_merging_forward.1} parent=111 // pred_check_branch
          %366 = sbr.rel (%p364) target = $region116
        $region115: #{patch_merging_forward.1} parent=111 // pred_region
          _
        $region116: #{patch_merging_forward.1} parent=111 // pred_fallthru
          _
        %s367 = sand.u32 %s54, 1
        %s368 = sand.u32 %s54, 1
        %s369 = smul.addr %s368, 64
        %s370 = scalar_lea.vmem [#allocation3], %s369
        // Predicated region
        $region117: #{patch_merging_forward.1} parent=111 // pred_check
          %p371 = pneg %p67
        $region118: #{patch_merging_forward.1} parent=111 // pred_check_branch
          %373 = sbr.rel (%p371) target = $region120
        $region119: #{patch_merging_forward.1} parent=111 // pred_region
          _
        $region120: #{patch_merging_forward.1} parent=111 // pred_fallthru
          _
        %s374 = sand.u32 %s28, 1
        %s375 = sand.u32 %s28, 1
        %s376 = smul.addr %s375, 64
        %s377 = scalar_lea.vmem [#allocation2], %s376
        %p378 = pneg %p41
        %p379 = pneg %p38
        %s380 = sand.u32 %s54, 1
        %s381 = sand.u32 %s54, 1
        %s382 = smul.addr %s381, 64
        %s383 = scalar_lea.vmem [#allocation3], %s382
        %p384 = pneg %p67
        %p385 = pneg %p64
        %p386 = pneg %p88
        %p387 = pneg %p85
        %p388 = pneg %p109
        %p389 = pneg %p106
        %p390 = pneg %p130
        %p391 = pneg %p127
        %p392 = pneg %p151
        %p393 = pneg %p148
        %p394 = pneg %p177
        %p395 = pneg %p174
        %s396 = sand.u32 %s164, 1
        %s397 = scalar_lea.sflag [#allocation5], %s396
        %s398 = sand.u32 %s164, 1
        %s399 = smul.addr %s398, 64
        %s400 = scalar_lea.vmem [#allocation4], %s399
        %s401 = smul.u32 8, %s20
        %s402 = smul.u32 8, %s20
        %s403 = smul.u32 8, %s20
        %v404 = vld [vmem:[%s363] sm:$0xff]
        %v405 = vld [vmem:[%s363 + $0x8] sm:$0xff]
        %v406 = vld [vmem:[%s363 + $0x10] sm:$0xff]
        %v407 = vld [vmem:[%s363 + $0x18] sm:$0xff]
        %v408 = vld [vmem:[%s363 + $0x20] sm:$0xff]
        %v409 = vld [vmem:[%s363 + $0x28] sm:$0xff]
        %v410 = vld [vmem:[%s363 + $0x30] sm:$0xff]
        %v411 = vld [vmem:[%s363 + $0x38] sm:$0xff]
        %v412 = vld [vmem:[%s370] sm:$0xff]
        %v413 = vld [vmem:[%s370 + $0x8] sm:$0xff]
        %v414 = vld [vmem:[%s370 + $0x10] sm:$0xff]
        %v415 = vld [vmem:[%s370 + $0x18] sm:$0xff]
        %v416 = vld [vmem:[%s370 + $0x20] sm:$0xff]
        %v417 = vld [vmem:[%s370 + $0x28] sm:$0xff]
        %v418 = vld [vmem:[%s370 + $0x30] sm:$0xff]
        %v419 = vld [vmem:[%s370 + $0x38] sm:$0xff]
        %v420 = vld [vmem:[%s2] sm:$0xff]
        %v421 = vld [vmem:[%s2 + $0x8] sm:$0xff]
        %v422 = vld [vmem:[%s2 + $0x10] sm:$0xff]
        %v423 = vld [vmem:[%s2 + $0x18] sm:$0xff]
        %v424 = vld [vmem:[%s2 + $0x20] sm:$0xff]
        %v425 = vld [vmem:[%s2 + $0x28] sm:$0xff]
        %v426 = vld [vmem:[%s2 + $0x30] sm:$0xff]
        %v427 = vld [vmem:[%s2 + $0x38] sm:$0xff]
        %v428 = vld [vmem:[%s2 + $0x40] sm:$0xff]
        %v429 = vld [vmem:[%s2 + $0x48] sm:$0xff]
        %v430 = vld [vmem:[%s2 + $0x50] sm:$0xff]
        %v431 = vld [vmem:[%s2 + $0x58] sm:$0xff]
        %v432 = vld [vmem:[%s2 + $0x60] sm:$0xff]
        %v433 = vld [vmem:[%s2 + $0x68] sm:$0xff]
        %v434 = vld [vmem:[%s2 + $0x70] sm:$0xff]
        %v435 = vld [vmem:[%s2 + $0x78] sm:$0xff]
        %v436 = vld [vmem:[%s3] sm:$0xff]
        %v437 = vld [vmem:[%s3 + $0x8] sm:$0xff]
        %v438 = vld [vmem:[%s3 + $0x10] sm:$0xff]
        %v439 = vld [vmem:[%s3 + $0x18] sm:$0xff]
        %v440 = vld [vmem:[%s3 + $0x20] sm:$0xff]
        %v441 = vld [vmem:[%s3 + $0x28] sm:$0xff]
        %v442 = vld [vmem:[%s3 + $0x30] sm:$0xff]
        %v443 = vld [vmem:[%s3 + $0x38] sm:$0xff]
        %v444 = vld [vmem:[%s3 + $0x40] sm:$0xff]
        %v445 = vld [vmem:[%s3 + $0x48] sm:$0xff]
        %v446 = vld [vmem:[%s3 + $0x50] sm:$0xff]
        %v447 = vld [vmem:[%s3 + $0x58] sm:$0xff]
        %v448 = vld [vmem:[%s3 + $0x60] sm:$0xff]
        %v449 = vld [vmem:[%s3 + $0x68] sm:$0xff]
        %v450 = vld [vmem:[%s3 + $0x70] sm:$0xff]
        %v451 = vld [vmem:[%s3 + $0x78] sm:$0xff]
        %452 = vmatpush.msra.mxu0 %v451
        %453 = vmatpush.msra.mxu0 %v450
        %454 = vmatpush.msra.mxu0 %v449
        %455 = vmatpush.msra.mxu0 %v448
        %456 = vmatpush.msra.mxu0 %v447
        %457 = vmatpush.msra.mxu0 %v446
        %458 = vmatpush.msra.mxu0 %v445
        %459 = vmatpush.msra.mxu0 %v444
        %460 = vmatpush.msra.mxu0 %v443
        %461 = vmatpush.msra.mxu0 %v442
        %462 = vmatpush.msra.mxu0 %v441
        %463 = vmatpush.msra.mxu0 %v440
        %464 = vmatpush.msra.mxu0 %v439
        %465 = vmatpush.msra.mxu0 %v438
        %466 = vmatpush.msra.mxu0 %v437
        %467 = vmatpush.msra.mxu0 %v436
        %468 = vmatmul.f32.gmra.mxu0 %v412
        %v469 = vpop.f32.mrf.mxu0
        %v470 = vadd.f32 0.0, %v469
        %471 = vmatmul.f32.gmra.mxu0 %v413
        %v472 = vpop.f32.mrf.mxu0
        %v473 = vadd.f32 0.0, %v472
        %474 = vmatmul.f32.gmra.mxu0 %v414
        %v475 = vpop.f32.mrf.mxu0
        %v476 = vadd.f32 0.0, %v475
        %477 = vmatmul.f32.gmra.mxu0 %v415
        %v478 = vpop.f32.mrf.mxu0
        %v479 = vadd.f32 0.0, %v478
        %480 = vmatmul.f32.gmra.mxu0 %v416
        %v481 = vpop.f32.mrf.mxu0
        %v482 = vadd.f32 0.0, %v481
        %483 = vmatmul.f32.gmra.mxu0 %v417
        %v484 = vpop.f32.mrf.mxu0
        %v485 = vadd.f32 0.0, %v484
        %486 = vmatmul.f32.gmra.mxu0 %v418
        %v487 = vpop.f32.mrf.mxu0
        %v488 = vadd.f32 0.0, %v487
        %489 = vmatmul.f32.gmra.mxu0 %v419
        %v490 = vpop.f32.mrf.mxu0
        %v491 = vadd.f32 0.0, %v490
        %492 = vdwg.mxu0
        %493 = vmatpush.msra.mxu0 %v435
        %494 = vmatpush.msra.mxu0 %v434
        %495 = vmatpush.msra.mxu0 %v433
        %496 = vmatpush.msra.mxu0 %v432
        %497 = vmatpush.msra.mxu0 %v431
        %498 = vmatpush.msra.mxu0 %v430
        %499 = vmatpush.msra.mxu0 %v429
        %500 = vmatpush.msra.mxu0 %v428
        %501 = vmatpush.msra.mxu0 %v427
        %502 = vmatpush.msra.mxu0 %v426
        %503 = vmatpush.msra.mxu0 %v425
        %504 = vmatpush.msra.mxu0 %v424
        %505 = vmatpush.msra.mxu0 %v423
        %506 = vmatpush.msra.mxu0 %v422
        %507 = vmatpush.msra.mxu0 %v421
        %508 = vmatpush.msra.mxu0 %v420
        %509 = vmatmul.f32.gmra.mxu0 %v404
        %v510 = vpop.f32.mrf.mxu0
        %v511 = vadd.f32 %v470, %v510
        %512 = vmatmul.f32.gmra.mxu0 %v405
        %v513 = vpop.f32.mrf.mxu0
        %v514 = vadd.f32 %v473, %v513
        %515 = vmatmul.f32.gmra.mxu0 %v406
        %v516 = vpop.f32.mrf.mxu0
        %v517 = vadd.f32 %v476, %v516
        %518 = vmatmul.f32.gmra.mxu0 %v407
        %v519 = vpop.f32.mrf.mxu0
        %v520 = vadd.f32 %v479, %v519
        %521 = vmatmul.f32.gmra.mxu0 %v408
        %v522 = vpop.f32.mrf.mxu0
        %v523 = vadd.f32 %v482, %v522
        %524 = vmatmul.f32.gmra.mxu0 %v409
        %v525 = vpop.f32.mrf.mxu0
        %v526 = vadd.f32 %v485, %v525
        %527 = vmatmul.f32.gmra.mxu0 %v410
        %v528 = vpop.f32.mrf.mxu0
        %v529 = vadd.f32 %v488, %v528
        %530 = vmatmul.f32.gmra.mxu0 %v411
        %v531 = vpop.f32.mrf.mxu0
        %v532 = vadd.f32 %v491, %v531
        %533 = vdwg.mxu0
        %534 = vadd.xlane.f32.xlu0 %v511
        %v535 = vpop.xlane.xlu0 %534
        %536 = vadd.xlane.f32.xlu0 %v514
        %v537 = vpop.xlane.xlu0 %536
        %538 = vadd.xlane.f32.xlu0 %v517
        %v539 = vpop.xlane.xlu0 %538
        %540 = vadd.xlane.f32.xlu0 %v520
        %v541 = vpop.xlane.xlu0 %540
        %542 = vadd.xlane.f32.xlu0 %v523
        %v543 = vpop.xlane.xlu0 %542
        %544 = vadd.xlane.f32.xlu0 %v526
        %v545 = vpop.xlane.xlu0 %544
        %546 = vadd.xlane.f32.xlu0 %v529
        %v547 = vpop.xlane.xlu0 %546
        %548 = vadd.xlane.f32.xlu0 %v532
        %v549 = vpop.xlane.xlu0 %548
        %v550 = vmul.f32 %v535, 0.0078125
        %v551 = vmul.f32 %v537, 0.0078125
        %v552 = vmul.f32 %v539, 0.0078125
        %v553 = vmul.f32 %v541, 0.0078125
        %v554 = vmul.f32 %v543, 0.0078125
        %v555 = vmul.f32 %v545, 0.0078125
        %v556 = vmul.f32 %v547, 0.0078125
        %v557 = vmul.f32 %v549, 0.0078125
        %v558 = vsub.f32 %v511, %v550
        %v559 = vsub.f32 %v514, %v551
        %v560 = vsub.f32 %v517, %v552
        %v561 = vsub.f32 %v520, %v553
        %v562 = vsub.f32 %v523, %v554
        %v563 = vsub.f32 %v526, %v555
        %v564 = vsub.f32 %v529, %v556
        %v565 = vsub.f32 %v532, %v557
        %v566 = vmul.f32 %v558, %v558
        %v567 = vmul.f32 %v559, %v559
        %v568 = vmul.f32 %v560, %v560
        %v569 = vmul.f32 %v561, %v561
        %v570 = vmul.f32 %v562, %v562
        %v571 = vmul.f32 %v563, %v563
        %v572 = vmul.f32 %v564, %v564
        %v573 = vmul.f32 %v565, %v565
        %574 = vadd.xlane.f32.xlu0 %v566
        %v575 = vpop.xlane.xlu0 %574
        %576 = vadd.xlane.f32.xlu0 %v567
        %v577 = vpop.xlane.xlu0 %576
        %578 = vadd.xlane.f32.xlu0 %v568
        %v579 = vpop.xlane.xlu0 %578
        %580 = vadd.xlane.f32.xlu0 %v569
        %v581 = vpop.xlane.xlu0 %580
        %582 = vadd.xlane.f32.xlu0 %v570
        %v583 = vpop.xlane.xlu0 %582
        %584 = vadd.xlane.f32.xlu0 %v571
        %v585 = vpop.xlane.xlu0 %584
        %586 = vadd.xlane.f32.xlu0 %v572
        %v587 = vpop.xlane.xlu0 %586
        %588 = vadd.xlane.f32.xlu0 %v573
        %v589 = vpop.xlane.xlu0 %588
        %v590 = vmul.f32 %v575, 0.0078125
        %v591 = vmul.f32 %v577, 0.0078125
        %v592 = vmul.f32 %v579, 0.0078125
        %v593 = vmul.f32 %v581, 0.0078125
        %v594 = vmul.f32 %v583, 0.0078125
        %v595 = vmul.f32 %v585, 0.0078125
        %v596 = vmul.f32 %v587, 0.0078125
        %v597 = vmul.f32 %v589, 0.0078125
        %v598 = vadd.f32 %v590, 1e-05
        %v599 = vadd.f32 %v591, 1e-05
        %v600 = vadd.f32 %v592, 1e-05
        %v601 = vadd.f32 %v593, 1e-05
        %v602 = vadd.f32 %v594, 1e-05
        %v603 = vadd.f32 %v595, 1e-05
        %v604 = vadd.f32 %v596, 1e-05
        %v605 = vadd.f32 %v597, 1e-05
        %v606 = vrsqrt.pop %v598
        %v607 = vmul.f32 %v606, %v598
        %v608 = vmul.f32 %v607, %v606
        %v609 = vmul.f32 0.5, %v608
        %v610 = vsub.f32 1.5, %v609
        %v611 = vmul.f32 %v606, %v610
        %vm612 = vweird.f32 %v598
        %vm613 = vweird.f32 %v606
        %vm614 = vmor %vm612, %vm613
        %v615 = vsel %vm614, %v606, %v611
        %v616 = vrsqrt.pop %v599
        %v617 = vmul.f32 %v616, %v599
        %v618 = vmul.f32 %v617, %v616
        %v619 = vmul.f32 0.5, %v618
        %v620 = vsub.f32 1.5, %v619
        %v621 = vmul.f32 %v616, %v620
        %vm622 = vweird.f32 %v599
        %vm623 = vweird.f32 %v616
        %vm624 = vmor %vm622, %vm623
        %v625 = vsel %vm624, %v616, %v621
        %v626 = vrsqrt.pop %v600
        %v627 = vmul.f32 %v626, %v600
        %v628 = vmul.f32 %v627, %v626
        %v629 = vmul.f32 0.5, %v628
        %v630 = vsub.f32 1.5, %v629
        %v631 = vmul.f32 %v626, %v630
        %vm632 = vweird.f32 %v600
        %vm633 = vweird.f32 %v626
        %vm634 = vmor %vm632, %vm633
        %v635 = vsel %vm634, %v626, %v631
        %v636 = vrsqrt.pop %v601
        %v637 = vmul.f32 %v636, %v601
        %v638 = vmul.f32 %v637, %v636
        %v639 = vmul.f32 0.5, %v638
        %v640 = vsub.f32 1.5, %v639
        %v641 = vmul.f32 %v636, %v640
        %vm642 = vweird.f32 %v601
        %vm643 = vweird.f32 %v636
        %vm644 = vmor %vm642, %vm643
        %v645 = vsel %vm644, %v636, %v641
        %v646 = vrsqrt.pop %v602
        %v647 = vmul.f32 %v646, %v602
        %v648 = vmul.f32 %v647, %v646
        %v649 = vmul.f32 0.5, %v648
        %v650 = vsub.f32 1.5, %v649
        %v651 = vmul.f32 %v646, %v650
        %vm652 = vweird.f32 %v602
        %vm653 = vweird.f32 %v646
        %vm654 = vmor %vm652, %vm653
        %v655 = vsel %vm654, %v646, %v651
        %v656 = vrsqrt.pop %v603
        %v657 = vmul.f32 %v656, %v603
        %v658 = vmul.f32 %v657, %v656
        %v659 = vmul.f32 0.5, %v658
        %v660 = vsub.f32 1.5, %v659
        %v661 = vmul.f32 %v656, %v660
        %vm662 = vweird.f32 %v603
        %vm663 = vweird.f32 %v656
        %vm664 = vmor %vm662, %vm663
        %v665 = vsel %vm664, %v656, %v661
        %v666 = vrsqrt.pop %v604
        %v667 = vmul.f32 %v666, %v604
        %v668 = vmul.f32 %v667, %v666
        %v669 = vmul.f32 0.5, %v668
        %v670 = vsub.f32 1.5, %v669
        %v671 = vmul.f32 %v666, %v670
        %vm672 = vweird.f32 %v604
        %vm673 = vweird.f32 %v666
        %vm674 = vmor %vm672, %vm673
        %v675 = vsel %vm674, %v666, %v671
        %v676 = vrsqrt.pop %v605
        %v677 = vmul.f32 %v676, %v605
        %v678 = vmul.f32 %v677, %v676
        %v679 = vmul.f32 0.5, %v678
        %v680 = vsub.f32 1.5, %v679
        %v681 = vmul.f32 %v676, %v680
        %vm682 = vweird.f32 %v605
        %vm683 = vweird.f32 %v676
        %vm684 = vmor %vm682, %vm683
        %v685 = vsel %vm684, %v676, %v681
        %v686 = vmul.f32 %v558, %v615
        %v687 = vmul.f32 %v559, %v625
        %v688 = vmul.f32 %v560, %v635
        %v689 = vmul.f32 %v561, %v645
        %v690 = vmul.f32 %v562, %v655
        %v691 = vmul.f32 %v563, %v665
        %v692 = vmul.f32 %v564, %v675
        %v693 = vmul.f32 %v565, %v685
        %v694 = vld [vmem:[%s4] sm:$0x1]
        %v696 = vperm.slane %v694, 0
        %v698 = vmul.f32 %v686, %v696
        %v699 = vmul.f32 %v687, %v696
        %v700 = vmul.f32 %v688, %v696
        %v701 = vmul.f32 %v689, %v696
        %v702 = vmul.f32 %v690, %v696
        %v703 = vmul.f32 %v691, %v696
        %v704 = vmul.f32 %v692, %v696
        %v705 = vmul.f32 %v693, %v696
        %v706 = vld [vmem:[%s5] sm:$0x1]
        %v708 = vperm.slane %v706, 0
        %v710 = vadd.f32 %v698, %v708
        %v711 = vadd.f32 %v699, %v708
        %v712 = vadd.f32 %v700, %v708
        %v713 = vadd.f32 %v701, %v708
        %v714 = vadd.f32 %v702, %v708
        %v715 = vadd.f32 %v703, %v708
        %v716 = vadd.f32 %v704, %v708
        %v717 = vadd.f32 %v705, %v708
        %718 = vst [vmem:[%s400] sm:$0xff] %v710
        %719 = vst [vmem:[%s400 + $0x8] sm:$0xff] %v711
        %720 = vst [vmem:[%s400 + $0x10] sm:$0xff] %v712
        %721 = vst [vmem:[%s400 + $0x18] sm:$0xff] %v713
        %722 = vst [vmem:[%s400 + $0x20] sm:$0xff] %v714
        %723 = vst [vmem:[%s400 + $0x28] sm:$0xff] %v715
        %724 = vst [vmem:[%s400 + $0x30] sm:$0xff] %v716
        %725 = vst [vmem:[%s400 + $0x38] sm:$0xff] %v717
        %s726 = sand.u32 %s164, 1
        %s727 = scalar_lea.sflag [#allocation5], %s726
        %s728 = sand.u32 %s164, 1
        %s729 = smul.addr %s728, 64
        %s730 = scalar_lea.vmem [#allocation4], %s729
        // Predicated region
        $region121: #{patch_merging_forward.1} parent=111 // pred_check
          %p731 = pneg %p174
        $region122: #{patch_merging_forward.1} parent=111 // pred_check_branch
          %733 = sbr.rel (%p731) target = $region124
        $region123: #{patch_merging_forward.1} parent=111 // pred_region
          %s734 = smul.u32 8, %s20
          %736 = vsyncadd %s727, 0
          %s737 = smul.addr %s734, 8
          %s738 = scalar_lea.hbm %s6, %s737
          %s739 = sshll.u32 %s730, 4
          %s740 = int_to_ptr.vmem [resolvable:$true] %s739
          %s741 = sshll.u32 %s738, 4
          %s742 = int_to_ptr.hbm [resolvable:$true] %s741
          %747 = dma.vmem_to_hbm [thread:$0]  %s740, 1024, %s742, %s727, 128, 128, 8
        $region124: #{patch_merging_forward.1} parent=111 // pred_fallthru
          _
      $region112: #{patch_merging_forward.1} parent=5 // pred_fallthru
        _
      %p748 = scmp.le.s32.totalorder 2, %s15
      // Predicated region
      $region125: #{patch_merging_forward.1} parent=5 // pred_check
        %p749 = pneg %p748
      $region126: #{patch_merging_forward.1} parent=5 // pred_check_branch
        %751 = sbr.rel (%p749) target = $region128
      $region127: #{patch_merging_forward.1} parent=5 // pred_region
        %s752 = ssub.s32 %s15, 2
        // Predicated region
        $region129: #{patch_merging_forward.1} parent=127 // pred_check
          %p753 = pneg %p180
        $region130: #{patch_merging_forward.1} parent=127 // pred_check_branch
          %755 = sbr.rel (%p753) target = $region132
        $region131: #{patch_merging_forward.1} parent=127 // pred_region
          %s756 = sand.u32 %s165, 1
          %s757 = scalar_lea.sflag [#allocation5], %s756
          %s758 = sand.u32 %s165, 1
          %s759 = smul.addr %s758, 64
          %s760 = scalar_lea.vmem [#allocation4], %s759
          %762 = dma.done %s757, 1024
        $region132: #{patch_merging_forward.1} parent=127 // pred_fallthru
          _
      $region128: #{patch_merging_forward.1} parent=5 // pred_fallthru
        _
    $region6: #{patch_merging_forward.1} parent=1 // loop_footer
      %s19 = sadd.s32 1, %s15
    $region7: #{patch_merging_forward.1} parent=1 // loop_footer_branch
      %14 = sbr.rel target = $region3
    $region8: #{patch_merging_forward.1} parent=1 // loop_exit
      _
    %763 = vsyncpa [#allocation5], 1
    %s764 = scalar_lea.sflag [#allocation5], 1
    %765 = vsyncpa %s764, 1

</llo_original>
